<compile_context>
chip_gen: v7x
topology: tpu7x:2x2x1
jax: 0.10.0
libtpu: 0.0.40
codegen_flags: <defaults>
</compile_context>

<pallas_src>
import functools

import jax
import jax.numpy as jnp
from jax.experimental import pallas as pl
from jax.experimental.pallas import tpu as pltpu


def _round_up(n, m):
    return ((n + m - 1) // m) * m


def mlp_kernel(x_ref, w1t_ref, b1_ref, w2t_ref, b2_ref, w3_ref, b3_ref, o_ref):
    """One batch tile, batch-on-lanes layout.

    x_ref : (IN,  TB)  activations, batch along lanes (lane-dense)
    w1t   : (HID, IN)  pre-transposed so h = W1^T x
    b1    : (HID, 1)   column bias, broadcasts along lanes
    w2t   : (HID, HID)
    b2    : (HID, 1)
    w3    : (HID, 1)   final layer kept (in, out) for the VPU reduce
    b3    : (1, 1)
    o_ref : (1, TB)    lane-dense output tile
    """
    x = x_ref[...].astype(jnp.float32)
    # layer 1: (HID, IN) @ (IN, TB) -> (HID, TB); result is lane-dense
    h1 = jnp.dot(w1t_ref[...], x, preferred_element_type=jnp.float32) + b1_ref[...]
    h1 = jnp.maximum(h1, 0.0)
    # layer 2: (HID, HID) @ (HID, TB) -> (HID, TB)
    h2 = jnp.dot(w2t_ref[...], h1, preferred_element_type=jnp.float32) + b2_ref[...]
    h2 = jnp.maximum(h2, 0.0)
    # layer 3 (HID -> 1): VPU multiply + sublane reduce instead of an M=1 matmul.
    out = jnp.sum(w3_ref[...] * h2, axis=0, keepdims=True) + b3_ref[...]
    o_ref[...] = out.astype(o_ref.dtype)


def market_predictor_linear_fm(x_t, params, *, batch_tile=32768):
    """Features-major entry point. x_t: (input_features, B) -> (1, B).

    No host-side layout changes; x is read from HBM exactly once.
    """
    w1, b1, w2, b2, w3, b3 = params          # w: (in, out), b: (1, out)
    in_features, B = x_t.shape
    hidden = w1.shape[1]
    out_features = w3.shape[1]
    assert out_features == 1, "kernel specializes the hidden->1 head as a VPU reduce"

    # Batch tile: lane-multiple; big enough to amortize per-step overhead but
    # capped at ~ceil(B/2) so a v7x megacore gets >=2 parallel tiles.
    two_tile_cap = _round_up(max(1, -(-B // 2)), 128)
    tb = max(128, _round_up(min(batch_tile, two_tile_cap), 128))
    grid = (pl.cdiv(B, tb),)   # ragged last tile handled by Pallas masking

    w1t = w1.T                       # (HID, IN)
    w2t = w2.T                       # (HID, HID)
    b1c = b1.reshape(hidden, 1)      # column biases broadcast along lanes
    b2c = b2.reshape(hidden, 1)
    w3c = w3.reshape(hidden, 1)
    b3c = b3.reshape(1, 1)

    # Weights/biases: same block index every grid step -> stay VMEM-resident.
    def resident(a):
        return pl.BlockSpec(a.shape, lambda i: (0, 0))

    param_bytes = sum(int(p.size) * 4 for p in (w1t, b1c, w2t, b2c, w3c, b3c))
    cost = pl.CostEstimate(
        flops=int(2 * B * (in_features * hidden + hidden * hidden + hidden)),
        transcendentals=0,
        bytes_accessed=int(x_t.size * x_t.dtype.itemsize + B * 4 + param_bytes),
    )

    out_row = pl.pallas_call(
        mlp_kernel,
        out_shape=jax.ShapeDtypeStruct((1, B), jnp.float32),
        grid=grid,
        in_specs=[
            pl.BlockSpec((in_features, tb), lambda i: (0, i)),   # x batch tile
            resident(w1t), resident(b1c),
            resident(w2t), resident(b2c),
            resident(w3c), resident(b3c),
        ],
        out_specs=pl.BlockSpec((1, tb), lambda i: (0, i)),
        compiler_params=pltpu.CompilerParams(
            dimension_semantics=("parallel",),        # batch tiles independent
            vmem_limit_bytes=48 * 1024 * 1024,        # fits v5e/v6e and v7x (64 MiB phys)
            allow_input_fusion=[True] + [False] * 6,  # let XLA fuse x's producer (e.g. x.T)
        ),
        cost_estimate=cost,
    )(x_t, w1t, b1c, w2t, b2c, w3c, b3c)
    return out_row


def market_predictor_linear(x, params, *, batch_tile=32768):
    """x: (B, input_features) f32 -> (B, 1) f32 (matches the PyTorch module)."""
    B, _ = x.shape
    # Only remaining host layout op; fused into the pallas_call input when the
    # caller is jitted (allow_input_fusion), or avoided entirely by calling
    # market_predictor_linear_fm with features-major data from the producer.
    out_row = market_predictor_linear_fm(x.T, params, batch_tile=batch_tile)
    # (1, B) -> (B, 1) is a contiguity-preserving reshape (bitcast), not a copy.
    return out_row.reshape(B, 1)


def init_params(key, input_features=9, hidden_units=8, output_features=1):
    """PyTorch nn.Linear default init: U(-1/sqrt(fan_in), 1/sqrt(fan_in))."""
    def linear_init(k, fan_in, fan_out):
        kw, kb = jax.random.split(k)
        bound = 1.0 / jnp.sqrt(jnp.float32(fan_in))
        w = jax.random.uniform(kw, (fan_in, fan_out), jnp.float32, -bound, bound)
        b = jax.random.uniform(kb, (1, fan_out), jnp.float32, -bound, bound)
        return w, b

    k1, k2, k3 = jax.random.split(key, 3)
    w1, b1 = linear_init(k1, input_features, hidden_units)
    w2, b2 = linear_init(k2, hidden_units, hidden_units)
    w3, b3 = linear_init(k3, hidden_units, output_features)
    return (w1, b1, w2, b2, w3, b3)


def reference_forward(x, params):
    w1, b1, w2, b2, w3, b3 = params
    h1 = jnp.maximum(x @ w1 + b1, 0.0)
    h2 = jnp.maximum(h1 @ w2 + b2, 0.0)
    return h2 @ w3 + b3


if __name__ == "__main__":
    key = jax.random.PRNGKey(0)
    k_params, k_x, k_x2 = jax.random.split(key, 3)

    input_features, hidden_units, output_features = 9, 8, 1
    params = init_params(k_params, input_features, hidden_units, output_features)

    # Small, spec-sized batch. Jit so the (B,F)->(F,B) transpose can fuse into
    # the pallas_call input (allow_input_fusion) instead of a separate HBM pass.
    fwd = jax.jit(market_predictor_linear)
    batch = 8
    x = jax.random.normal(k_x, (batch, input_features), dtype=jnp.float32)
    out = jax.block_until_ready(fwd(x, params))
    ref = reference_forward(x, params)
    assert out.shape == (batch, output_features)
    assert jnp.allclose(out, ref, atol=1e-5, rtol=1e-5), "mismatch vs JAX reference"

    # Multi-tile grid + ragged (non-multiple-of-tile) batch path, no padding.
    fwd_tiled = jax.jit(functools.partial(market_predictor_linear, batch_tile=512))
    batch2 = 2085
    x2 = jax.random.normal(k_x2, (batch2, input_features), dtype=jnp.float32)
    out2 = jax.block_until_ready(fwd_tiled(x2, params))
    ref2 = reference_forward(x2, params)
    assert out2.shape == (batch2, output_features)
    assert jnp.allclose(out2, ref2, atol=1e-5, rtol=1e-5), "mismatch (tiled path)"

    print("KERNEL_OK")
</pallas_src>

<mosaic_0001>
module attributes {stable_mosaic.version = 11 : i64} {
  func.func @mlp_kernel(%arg0: i32, %arg1: memref<9x128xf32, #tpu.memory_space<vmem>>, %arg2: memref<8x9xf32, #tpu.memory_space<vmem>>, %arg3: memref<8x1xf32, #tpu.memory_space<vmem>>, %arg4: memref<8x8xf32, #tpu.memory_space<vmem>>, %arg5: memref<8x1xf32, #tpu.memory_space<vmem>>, %arg6: memref<8x1xf32, #tpu.memory_space<vmem>>, %arg7: memref<1x1xf32, #tpu.memory_space<vmem>>, %arg8: memref<1x128xf32, #tpu.memory_space<vmem>>) attributes {dimension_semantics = [#tpu.dimension_semantics<parallel>], iteration_bounds = array<i64: 1>, scalar_prefetch = 0 : i64, scratch_operands = 0 : i64, tpu.core_type = #tpu.core_type<tc>, window_params = [{transform_indices = @transform_0, window_bounds = array<i64: 9, 128>}, {pipeline_mode = #tpu.pipeline_mode<synchronous>, transform_indices = @transform_1, window_bounds = array<i64: 8, 9>}, {pipeline_mode = #tpu.pipeline_mode<synchronous>, transform_indices = @transform_2, window_bounds = array<i64: 8, 1>}, {pipeline_mode = #tpu.pipeline_mode<synchronous>, transform_indices = @transform_3, window_bounds = array<i64: 8, 8>}, {pipeline_mode = #tpu.pipeline_mode<synchronous>, transform_indices = @transform_4, window_bounds = array<i64: 8, 1>}, {pipeline_mode = #tpu.pipeline_mode<synchronous>, transform_indices = @transform_5, window_bounds = array<i64: 8, 1>}, {pipeline_mode = #tpu.pipeline_mode<synchronous>, transform_indices = @transform_6, window_bounds = array<i64: 1, 1>}, {transform_indices = @transform_7, window_bounds = array<i64: 1, 128>}]} {
    %c0 = arith.constant 0 : index
    %c0_0 = arith.constant 0 : index
    %0 = vector.load %arg1[%c0, %c0_0] : memref<9x128xf32, #tpu.memory_space<vmem>>, vector<9x128xf32>
    %c0_1 = arith.constant 0 : index
    %c0_2 = arith.constant 0 : index
    %1 = vector.load %arg2[%c0_1, %c0_2] : memref<8x9xf32, #tpu.memory_space<vmem>>, vector<8x9xf32>
    %cst = arith.constant dense<0.000000e+00> : vector<8x128xf32>
    %2 = tpu.matmul %1, %0, %cst {dimension_numbers = #tpu.dot_dimension_numbers<[1], [0], [0], [1], [0, 0, 1, 1], [], []>} : vector<8x9xf32>, vector<9x128xf32>, vector<8x128xf32> -> vector<8x128xf32>
    %c0_3 = arith.constant 0 : index
    %c0_4 = arith.constant 0 : index
    %3 = vector.load %arg3[%c0_3, %c0_4] : memref<8x1xf32, #tpu.memory_space<vmem>>, vector<8x1xf32>
    %4 = vector.broadcast %3 : vector<8x1xf32> to vector<8x128xf32>
    %5 = arith.addf %2, %4 : vector<8x128xf32>
    %cst_5 = arith.constant 0.000000e+00 : f32
    %6 = vector.broadcast %cst_5 : f32 to vector<8x128xf32>
    %7 = arith.maximumf %5, %6 : vector<8x128xf32>
    %c0_6 = arith.constant 0 : index
    %c0_7 = arith.constant 0 : index
    %8 = vector.load %arg4[%c0_6, %c0_7] : memref<8x8xf32, #tpu.memory_space<vmem>>, vector<8x8xf32>
    %cst_8 = arith.constant dense<0.000000e+00> : vector<8x128xf32>
    %9 = tpu.matmul %8, %7, %cst_8 {dimension_numbers = #tpu.dot_dimension_numbers<[1], [0], [0], [1], [0, 0, 1, 1], [], []>} : vector<8x8xf32>, vector<8x128xf32>, vector<8x128xf32> -> vector<8x128xf32>
    %c0_9 = arith.constant 0 : index
    %c0_10 = arith.constant 0 : index
    %10 = vector.load %arg5[%c0_9, %c0_10] : memref<8x1xf32, #tpu.memory_space<vmem>>, vector<8x1xf32>
    %11 = vector.broadcast %10 : vector<8x1xf32> to vector<8x128xf32>
    %12 = arith.addf %9, %11 : vector<8x128xf32>
    %cst_11 = arith.constant 0.000000e+00 : f32
    %13 = vector.broadcast %cst_11 : f32 to vector<8x128xf32>
    %14 = arith.maximumf %12, %13 : vector<8x128xf32>
    %c0_12 = arith.constant 0 : index
    %c0_13 = arith.constant 0 : index
    %15 = vector.load %arg6[%c0_12, %c0_13] : memref<8x1xf32, #tpu.memory_space<vmem>>, vector<8x1xf32>
    %16 = vector.broadcast %15 : vector<8x1xf32> to vector<8x128xf32>
    %17 = arith.mulf %16, %14 : vector<8x128xf32>
    %cst_14 = arith.constant dense<0.000000e+00> : vector<128xf32>
    %18 = vector.multi_reduction <add>, %17, %cst_14 [0] : vector<8x128xf32> to vector<128xf32>
    %19 = vector.shape_cast %18 : vector<128xf32> to vector<1x128xf32>
    %c0_15 = arith.constant 0 : index
    %c0_16 = arith.constant 0 : index
    %20 = vector.load %arg7[%c0_15, %c0_16] : memref<1x1xf32, #tpu.memory_space<vmem>>, vector<1x1xf32>
    %21 = vector.broadcast %20 : vector<1x1xf32> to vector<1x128xf32>
    %22 = arith.addf %19, %21 : vector<1x128xf32>
    %c0_17 = arith.constant 0 : index
    %c0_18 = arith.constant 0 : index
    %23 = vector.load %arg8[%c0_17, %c0_18] : memref<1x128xf32, #tpu.memory_space<vmem>>, vector<1x128xf32>
    tpu.vector_store %arg8[%c0_17, %c0_18], %22 {strides = array<i32>} : memref<1x128xf32, #tpu.memory_space<vmem>>, vector<1x128xf32>,
    return
  }
  func.func @transform_0(%arg0: i32) -> (i32, i32) {
    %c0_i32 = arith.constant 0 : i32
    %c0_i32_0 = arith.constant 0 : i32
    return %c0_i32, %arg0 : i32, i32
  }
  func.func @transform_1(%arg0: i32) -> (i32, i32) {
    %c0_i32 = arith.constant 0 : i32
    %c0_i32_0 = arith.constant 0 : i32
    %c0_i32_1 = arith.constant 0 : i32
    return %c0_i32, %c0_i32_0 : i32, i32
  }
  func.func @transform_2(%arg0: i32) -> (i32, i32) {
    %c0_i32 = arith.constant 0 : i32
    %c0_i32_0 = arith.constant 0 : i32
    %c0_i32_1 = arith.constant 0 : i32
    return %c0_i32, %c0_i32_0 : i32, i32
  }
  func.func @transform_3(%arg0: i32) -> (i32, i32) {
    %c0_i32 = arith.constant 0 : i32
    %c0_i32_0 = arith.constant 0 : i32
    %c0_i32_1 = arith.constant 0 : i32
    return %c0_i32, %c0_i32_0 : i32, i32
  }
  func.func @transform_4(%arg0: i32) -> (i32, i32) {
    %c0_i32 = arith.constant 0 : i32
    %c0_i32_0 = arith.constant 0 : i32
    %c0_i32_1 = arith.constant 0 : i32
    return %c0_i32, %c0_i32_0 : i32, i32
  }
  func.func @transform_5(%arg0: i32) -> (i32, i32) {
    %c0_i32 = arith.constant 0 : i32
    %c0_i32_0 = arith.constant 0 : i32
    %c0_i32_1 = arith.constant 0 : i32
    return %c0_i32, %c0_i32_0 : i32, i32
  }
  func.func @transform_6(%arg0: i32) -> (i32, i32) {
    %c0_i32 = arith.constant 0 : i32
    %c0_i32_0 = arith.constant 0 : i32
    %c0_i32_1 = arith.constant 0 : i32
    return %c0_i32, %c0_i32_0 : i32, i32
  }
  func.func @transform_7(%arg0: i32) -> (i32, i32) {
    %c0_i32 = arith.constant 0 : i32
    %c0_i32_0 = arith.constant 0 : i32
    return %c0_i32, %arg0 : i32, i32
  }
}

</mosaic_0001>

<llo_original>
// kernel: market_predictor_linear.2
$region0: #{market_predictor_linear.2}
  #allocation0 [shape = 'u32[]', space=smem, size = 0x4, offset = 0x4, fixed_abs, tag = 'smem constant byte address 0x4 - core index']
  #allocation1 [shape = 'u32[144,128]{1,0:T(1,128)}', space=vmem, size = 0x12000, scoped, tag = 'internal scratch']
  #allocation2 [shape = 'f32[1,1]{1,0:T(1,128)S(1)}', space=vmem, size = 0x200, scoped, tag = 'scoped memory for market_predictor_linear.2']
  %s0 = inlined_call_operand.vmem [shape: f32[8,9], index: 0, kind: input, shape index: {}]
  %s1 = inlined_call_operand.vmem [shape: f32[8,1], index: 1, kind: input, shape index: {}]
  %s2 = inlined_call_operand.vmem [shape: f32[8,8], index: 2, kind: input, shape index: {}]
  %s3 = inlined_call_operand.vmem [shape: f32[8,1], index: 3, kind: input, shape index: {}]
  %s4 = inlined_call_operand.vmem [shape: f32[8,1], index: 4, kind: input, shape index: {}]
  %s5 = inlined_call_operand.<no memory space> [shape: f32[1,1], index: 5, kind: input, shape index: {}]
  %s6 = inlined_call_operand.vmem [shape: f32[8,9], index: 6, kind: input, shape index: {}]
  %s7 = inlined_call_operand.hbm [shape: f32[1,8], index: 7, kind: output, shape index: {}]
  %s8 = sld [smem:[#allocation0]]
  $region38: #{market_predictor_linear.2} parent=0
    _
  %s10 = ssub.s32 1, %s8
  %s11 = scalar_select 0, %s10, %s8
  %v12 = vstv %s5
  %13 = vst [vmem:[#allocation2] sm:$0x1] %v12
  $region1: #{market_predictor_linear.2} parent=0
    #allocation3 [shape = 'u8[512]{0}', space=vmem, size = 0x400, scoped, tag = 'output window, operand 0, single buffered']
    #allocation4 [shape = 's32[1]{0}', space=sflag, size = 0x4, scoped, tag = 'scoped memory for market_predictor_linear.2']
    #allocation5 [shape = 'u8[8192]{0}', space=vmem, size = 0x2000, dematerialized = true, scoped, tag = 'FusionAdapter Buffer %fusion.1 = f32[9,8]{1,0:T(8,128)} fusion(%param_6.1), kind=kLoop, calls=%fused_computation.1.clone, metadata={op_name="jit(market_predictor_linear)/transpose" stack_frame_id=7}']
    %14 = vsyncpa [#allocation4], 0
    // Predicated region
    $region2: #{market_predictor_linear.2} parent=1 // pred_check
      _
    $region3: #{market_predictor_linear.2} parent=1 // pred_check_branch
      %16 = sbr.rel (0) target = $region5
    $region4: #{market_predictor_linear.2} parent=1 // pred_region
      _
    $region5: #{market_predictor_linear.2} parent=1 // pred_fallthru
      _
    // Predicated region
    $region6: #{market_predictor_linear.2} parent=1 // pred_check
      _
    $region7: #{market_predictor_linear.2} parent=1 // pred_check_branch
      %18 = sbr.rel (0) target = $region9
    $region8: #{market_predictor_linear.2} parent=1 // pred_region
      _
    $region9: #{market_predictor_linear.2} parent=1 // pred_fallthru
      _
    // Predicated region
    $region10: #{market_predictor_linear.2} parent=1 // pred_check
      _
    $region11: #{market_predictor_linear.2} parent=1 // pred_check_branch
      %20 = sbr.rel (0) target = $region13
    $region12: #{market_predictor_linear.2} parent=1 // pred_region
      _
    $region13: #{market_predictor_linear.2} parent=1 // pred_fallthru
      _
    // Predicated region
    $region14: #{market_predictor_linear.2} parent=1 // pred_check
      _
    $region15: #{market_predictor_linear.2} parent=1 // pred_check_branch
      %22 = sbr.rel (0) target = $region17
    $region16: #{market_predictor_linear.2} parent=1 // pred_region
      _
    $region17: #{market_predictor_linear.2} parent=1 // pred_fallthru
      _
    // Predicated region
    $region18: #{market_predictor_linear.2} parent=1 // pred_check
      _
    $region19: #{market_predictor_linear.2} parent=1 // pred_check_branch
      %24 = sbr.rel (0) target = $region21
    $region20: #{market_predictor_linear.2} parent=1 // pred_region
      _
    $region21: #{market_predictor_linear.2} parent=1 // pred_fallthru
      _
    // Predicated region
    $region22: #{market_predictor_linear.2} parent=1 // pred_check
      _
    $region23: #{market_predictor_linear.2} parent=1 // pred_check_branch
      %26 = sbr.rel (0) target = $region25
    $region24: #{market_predictor_linear.2} parent=1 // pred_region
      _
    $region25: #{market_predictor_linear.2} parent=1 // pred_fallthru
      _
    // Predicated region
    $region26: #{market_predictor_linear.2} parent=1 // pred_check
      _
    $region27: #{market_predictor_linear.2} parent=1 // pred_check_branch
      %28 = sbr.rel (0) target = $region29
    $region28: #{market_predictor_linear.2} parent=1 // pred_region
      _
    $region29: #{market_predictor_linear.2} parent=1 // pred_fallthru
      _
    %v29 = vld [vmem:[%s6] sm:$0xff]
    %31 = vst [vmem:[#allocation5] sm:$0xff] %v29
    %s32 = scalar_lea.vmem %s6, 8
    %v33 = vld [vmem:[%s32] sm:$0xff]
    %s34 = scalar_lea.vmem [#allocation5], 8
    %36 = vst [vmem:[%s34] sm:$0xff] %v33
    %v37 = vld [vmem:[#allocation5] sm:$0xff]
    %v38 = vld [vmem:[#allocation5 + $0x8] sm:$0x1]
    %v39 = vld [vmem:[%s0] sm:$0xff]
    %v40 = vld [vmem:[%s1] sm:$0xff]
    %42 = vset.pattern.permute.xlu0 0
    %43 = vperm.xlu0 %42, %v40
    %v44 = vpop.permute.xlu0 %43
    %vm46 = vcmask 72704
    %v48 = vsel %vm46, %v39, 0
    %vm50 = vcmask 1040384
    %v52 = vsel %vm50, %v38, 0
    %54 = vmatprep.subr.mxu0 0.0
    %55 = vmatpush1.msra.mxu0 %v37
    %56 = vmatprep.subr.mxu0 0.0
    %57 = vmatpush1.msra.mxu0 %v52
    %58 = vmatprep.subr.mxu0 0.0
    %59 = vmatpush1.msra.mxu0 0.0
    %60 = vmatprep.subr.mxu0 0.0
    %61 = vmatpush1.msra.mxu0 0.0
    %62 = vmatprep.subr.mxu0 0.0
    %63 = vmatpush1.msra.mxu0 0.0
    %64 = vmatprep.subr.mxu0 0.0
    %65 = vmatpush1.msra.mxu0 0.0
    %66 = vmatprep.subr.mxu0 0.0
    %67 = vmatpush1.msra.mxu0 0.0
    %68 = vmatprep.subr.mxu0 0.0
    %69 = vmatpush1.msra.mxu0 0.0
    %70 = vmatprep.subr.mxu0 0.0
    %71 = vmatpush1.msra.mxu0 0.0
    %72 = vmatprep.subr.mxu0 0.0
    %73 = vmatpush1.msra.mxu0 0.0
    %74 = vmatprep.subr.mxu0 0.0
    %75 = vmatpush1.msra.mxu0 0.0
    %76 = vmatprep.subr.mxu0 0.0
    %77 = vmatpush1.msra.mxu0 0.0
    %78 = vmatprep.subr.mxu0 0.0
    %79 = vmatpush1.msra.mxu0 0.0
    %80 = vmatprep.subr.mxu0 0.0
    %81 = vmatpush1.msra.mxu0 0.0
    %82 = vmatprep.subr.mxu0 0.0
    %83 = vmatpush1.msra.mxu0 0.0
    %84 = vmatprep.subr.mxu0 0.0
    %85 = vmatpush1.msra.mxu0 0.0
    %86 = vmatprep.subr.mxu0 0.0
    %87 = vmatpush1.msra.mxu0 0.0
    %88 = vmatprep.subr.mxu0 0.0
    %89 = vmatpush1.msra.mxu0 0.0
    %90 = vmatprep.subr.mxu0 0.0
    %91 = vmatpush1.msra.mxu0 0.0
    %92 = vmatprep.subr.mxu0 0.0
    %93 = vmatpush1.msra.mxu0 0.0
    %94 = vmatprep.subr.mxu0 0.0
    %95 = vmatpush1.msra.mxu0 0.0
    %96 = vmatprep.subr.mxu0 0.0
    %97 = vmatpush1.msra.mxu0 0.0
    %98 = vmatprep.subr.mxu0 0.0
    %99 = vmatpush1.msra.mxu0 0.0
    %100 = vmatprep.subr.mxu0 0.0
    %101 = vmatpush1.msra.mxu0 0.0
    %102 = vmatprep.subr.mxu0 0.0
    %103 = vmatpush1.msra.mxu0 0.0
    %104 = vmatprep.subr.mxu0 0.0
    %105 = vmatpush1.msra.mxu0 0.0
    %106 = vmatprep.subr.mxu0 0.0
    %107 = vmatpush1.msra.mxu0 0.0
    %108 = vmatprep.subr.mxu0 0.0
    %109 = vmatpush1.msra.mxu0 0.0
    %110 = vmatprep.subr.mxu0 0.0
    %111 = vmatpush1.msra.mxu0 0.0
    %112 = vmatprep.subr.mxu0 0.0
    %113 = vmatpush1.msra.mxu0 0.0
    %114 = vmatprep.subr.mxu0 0.0
    %115 = vmatpush1.msra.mxu0 0.0
    %116 = vmatprep.subr.mxu0 0.0
    %117 = vmatpush1.msra.mxu0 0.0
    %118 = vmatprep.mubr.f32.mxu0 0.0
    %119 = vmatmul.mubr.f32.gmra.mrb[0].mxu0 %v48
    %v120 = vpop.f32.mrb[0].mxu0
    %v121 = vadd.f32 %v44, %v120
    %v122 = vpop.f32.mrb[0].mxu0
    %123 = vdwg.mxu0
    %v124 = vmax.f32 %v121, 0.0
    %v125 = vld [vmem:[%s2] sm:$0xff]
    %v126 = vld [vmem:[%s3] sm:$0xff]
    %128 = vset.pattern.permute.xlu0 0
    %129 = vperm.xlu0 %128, %v126
    %v130 = vpop.permute.xlu0 %129
    %vm132 = vcmask 64512
    %v134 = vsel %vm132, %v125, 0
    %136 = vmatprep.subr.mxu0 0.0
    %137 = vmatpush1.msra.mxu0 %v124
    %138 = vmatprep.subr.mxu0 0.0
    %139 = vmatpush1.msra.mxu0 0.0
    %140 = vmatprep.subr.mxu0 0.0
    %141 = vmatpush1.msra.mxu0 0.0
    %142 = vmatprep.subr.mxu0 0.0
    %143 = vmatpush1.msra.mxu0 0.0
    %144 = vmatprep.subr.mxu0 0.0
    %145 = vmatpush1.msra.mxu0 0.0
    %146 = vmatprep.subr.mxu0 0.0
    %147 = vmatpush1.msra.mxu0 0.0
    %148 = vmatprep.subr.mxu0 0.0
    %149 = vmatpush1.msra.mxu0 0.0
    %150 = vmatprep.subr.mxu0 0.0
    %151 = vmatpush1.msra.mxu0 0.0
    %152 = vmatprep.subr.mxu0 0.0
    %153 = vmatpush1.msra.mxu0 0.0
    %154 = vmatprep.subr.mxu0 0.0
    %155 = vmatpush1.msra.mxu0 0.0
    %156 = vmatprep.subr.mxu0 0.0
    %157 = vmatpush1.msra.mxu0 0.0
    %158 = vmatprep.subr.mxu0 0.0
    %159 = vmatpush1.msra.mxu0 0.0
    %160 = vmatprep.subr.mxu0 0.0
    %161 = vmatpush1.msra.mxu0 0.0
    %162 = vmatprep.subr.mxu0 0.0
    %163 = vmatpush1.msra.mxu0 0.0
    %164 = vmatprep.subr.mxu0 0.0
    %165 = vmatpush1.msra.mxu0 0.0
    %166 = vmatprep.subr.mxu0 0.0
    %167 = vmatpush1.msra.mxu0 0.0
    %168 = vmatprep.subr.mxu0 0.0
    %169 = vmatpush1.msra.mxu0 0.0
    %170 = vmatprep.subr.mxu0 0.0
    %171 = vmatpush1.msra.mxu0 0.0
    %172 = vmatprep.subr.mxu0 0.0
    %173 = vmatpush1.msra.mxu0 0.0
    %174 = vmatprep.subr.mxu0 0.0
    %175 = vmatpush1.msra.mxu0 0.0
    %176 = vmatprep.subr.mxu0 0.0
    %177 = vmatpush1.msra.mxu0 0.0
    %178 = vmatprep.subr.mxu0 0.0
    %179 = vmatpush1.msra.mxu0 0.0
    %180 = vmatprep.subr.mxu0 0.0
    %181 = vmatpush1.msra.mxu0 0.0
    %182 = vmatprep.subr.mxu0 0.0
    %183 = vmatpush1.msra.mxu0 0.0
    %184 = vmatprep.subr.mxu0 0.0
    %185 = vmatpush1.msra.mxu0 0.0
    %186 = vmatprep.subr.mxu0 0.0
    %187 = vmatpush1.msra.mxu0 0.0
    %188 = vmatprep.subr.mxu0 0.0
    %189 = vmatpush1.msra.mxu0 0.0
    %190 = vmatprep.subr.mxu0 0.0
    %191 = vmatpush1.msra.mxu0 0.0
    %192 = vmatprep.subr.mxu0 0.0
    %193 = vmatpush1.msra.mxu0 0.0
    %194 = vmatprep.subr.mxu0 0.0
    %195 = vmatpush1.msra.mxu0 0.0
    %196 = vmatprep.subr.mxu0 0.0
    %197 = vmatpush1.msra.mxu0 0.0
    %198 = vmatprep.subr.mxu0 0.0
    %199 = vmatpush1.msra.mxu0 0.0
    %200 = vmatprep.mubr.f32.mxu0 0.0
    %201 = vmatmul.mubr.f32.gmra.mrb[0].mxu0 %v134
    %v202 = vpop.f32.mrb[0].mxu0
    %v203 = vadd.f32 %v130, %v202
    %v204 = vpop.f32.mrb[0].mxu0
    %205 = vdwg.mxu0
    %v206 = vmax.f32 %v203, 0.0
    %v207 = vld [vmem:[%s4] sm:$0xff]
    %209 = vset.pattern.permute.xlu0 0
    %210 = vperm.xlu0 %209, %v207
    %v211 = vpop.permute.xlu0 %210
    %v213 = vmul.f32 %v211, %v206
    %v214 = vrot.slane %v213, 4
    %v215 = vadd.f32 %v213, %v214
    %v216 = vrot.slane %v215, 2
    %v217 = vadd.f32 %v215, %v216
    %v218 = vrot.slane %v217, 1
    %v219 = vadd.f32 %v217, %v218
    %v220 = vld [vmem:[#allocation2] sm:$0x1]
    %222 = vset.pattern.permute.xlu0 0
    %223 = vperm.xlu0 %222, %v220
    %v224 = vpop.permute.xlu0 %223
    %v226 = vlaneseq
    %v227 = vshrl.u32 %v226, 7
    %v228 = vsub.s32 0, %v227
    %v229 = vrot.slane %v224, %v228
    %v230 = vadd.f32 %v219, %v229
    %231 = vst [vmem:[#allocation3] sm:$0x1] %v230
    // Predicated region
    $region30: #{market_predictor_linear.2} parent=1 // pred_check
      _
    $region31: #{market_predictor_linear.2} parent=1 // pred_check_branch
      %233 = sbr.rel (0) target = $region33
    $region32: #{market_predictor_linear.2} parent=1 // pred_region
      %s235 = ssub.s32 16, 16
      %236 = vsyncadd [#allocation4], %s235
      %s238 = sshll.u32 [#allocation3], 4
      %s239 = int_to_ptr.vmem [resolvable:$true] %s238
      %241 = dma.vmem_to_hbm [thread:$0]  %s239, 16, %s7, [#allocation4]
    $region33: #{market_predictor_linear.2} parent=1 // pred_fallthru
      _
    // Predicated region
    $region34: #{market_predictor_linear.2} parent=1 // pred_check
      _
    $region35: #{market_predictor_linear.2} parent=1 // pred_check_branch
      %243 = sbr.rel (0) target = $region37
    $region36: #{market_predictor_linear.2} parent=1 // pred_region
      %244 = dma.done [#allocation4], 16
    $region37: #{market_predictor_linear.2} parent=1 // pred_fallthru
      _
    %245 = vsyncpa [#allocation4], 1

</llo_original>
